<compile_context>
chip_gen: v5e
topology: v5e:2x2
jax: 0.10.0
libtpu: 0.0.40
codegen_flags: <defaults>
</compile_context>

<pallas_src>
import functools

import numpy as np
import jax
import jax.numpy as jnp
from jax.experimental import pallas as pl
from jax.experimental.pallas import tpu as pltpu

ALPHA = 1.0
BETA = 1.0
MARGIN = 0.5


def _softplus(t):
    """Numerically stable log(1 + exp(t)): one exp + one log1p on the EUP."""
    return jnp.log1p(jnp.exp(-jnp.abs(t))) + jnp.maximum(t, 0.0)


def _binomial_kernel(xr_ref, xc_ref, trow_ref, tcol_ref, pc_ref, cval_ref, out_ref,
                     pos_acc, neg_acc, simp_acc, simt_acc,
                     *, n_total, padded):
    i = pl.program_id(0)
    j = pl.program_id(1)
    last_i = pl.num_programs(0) - 1
    last_j = pl.num_programs(1) - 1

    tm = pc_ref.shape[0]
    tn = xc_ref.shape[0]
    acc_w = pos_acc.shape[1]

    @pl.when(j == 0)
    def _():
        pos_acc[...] = jnp.zeros_like(pos_acc)
        neg_acc[...] = jnp.zeros_like(neg_acc)
        simp_acc[...] = jnp.zeros_like(simp_acc)
        simt_acc[...] = jnp.zeros_like(simt_acc)

    # sim tile = X_rows @ X_cols.T on the MXU (K on lanes), f32 accumulator.
    sim = jax.lax.dot_general(xr_ref[...], xc_ref[...], (((1,), (1,)), ((), ())),
                              preferred_element_type=jnp.float32)  # (tm, tn)

    same = trow_ref[...] == tcol_ref[...]          # (tm, 1) == (1, tn) -> (tm, tn)
    if padded:
        cval = cval_ref[...] > 0                   # (1, tn) column-validity
        pos_mask = jnp.logical_and(same, cval)
        neg_mask = jnp.logical_and(jnp.logical_not(same), cval)
    else:
        pos_mask = same
        neg_mask = jnp.logical_not(same)

    if ALPHA == 1.0 and BETA == 1.0:
        # softplus(z) = softplus(-z) + z; no multiplies by the 1.0 coefficients.
        neg_z = MARGIN - sim                       # = -z
        pos_term = _softplus(neg_z)                # softplus(-z)
        neg_term = pos_term - neg_z                # softplus(z)
    else:
        z = sim - MARGIN
        pos_term = _softplus(-BETA * z)
        neg_term = _softplus(ALPHA * z)

    def lane_fold(x):
        # (tm, tn) -> (tm, acc_w): add 128-wide lane groups with plain vreg adds
        # (no XLU); the real cross-lane reduce is deferred to j == last_j.
        chunks = tn // acc_w
        if chunks == 1:
            return x
        acc = x[:, 0:acc_w]
        for c in range(1, chunks):
            acc = acc + x[:, c * acc_w:(c + 1) * acc_w]
        return acc

    pos_acc[...] += lane_fold(jnp.where(pos_mask, pos_term, 0.0))
    neg_acc[...] += lane_fold(jnp.where(neg_mask, neg_term, 0.0))

    # mean_pos_sim / mean_neg_sim only need the globally-last row, which always
    # lives in the last row block (padding < tm): only accumulate there.
    # Padded-column sims are exactly 0 (zero-padded X), so simt needs no mask.
    @pl.when(i == last_i)
    def _():
        simp_acc[...] += lane_fold(jnp.where(pos_mask, sim, 0.0))
        simt_acc[...] += lane_fold(sim)

    @pl.when(j == last_j)
    def _():
        pos_sum = jnp.sum(pos_acc[...], axis=1, keepdims=True)   # (tm, 1)
        neg_sum = jnp.sum(neg_acc[...], axis=1, keepdims=True)
        pc = pc_ref[...]                                         # (tm, 1), >= 1
        nc = jnp.float32(n_total) - pc
        valid = (nc > 0.0).astype(jnp.float32)

        row_idx = jax.lax.broadcasted_iota(jnp.int32, (tm, 1), 0)
        row_global = i * tm + row_idx

        per_row = (pos_sum / pc + neg_sum / jnp.maximum(nc, 1.0)) * valid
        if padded:
            row_valid = (row_global < n_total).astype(jnp.float32)
            per_row = per_row * row_valid
            invalid = jnp.sum((1.0 - valid) * row_valid)
        else:
            invalid = jnp.sum(1.0 - valid)
        loss_part = jnp.sum(per_row)

        sel_last = row_global == (n_total - 1)     # globally-last real row
        simp = jnp.sum(simp_acc[...], axis=1, keepdims=True)
        simt = jnp.sum(simt_acc[...], axis=1, keepdims=True)
        mpos = jnp.sum(jnp.where(sel_last, simp / pc, 0.0))
        mneg = jnp.sum(jnp.where(sel_last,
                                 (simt - simp) / jnp.maximum(nc, 1.0), 0.0))

        # Pack [loss_part, invalid, mpos, mneg] into one lane-dense (8,128) tile
        # -> single unmasked store + one writeback DMA per row block.
        lane = jax.lax.broadcasted_iota(jnp.int32, (8, 128), 1)
        out_ref[...] = (jnp.where(lane == 0, loss_part, 0.0)
                        + jnp.where(lane == 1, invalid, 0.0)
                        + jnp.where(lane == 2, mpos, 0.0)
                        + jnp.where(lane == 3, mneg, 0.0))


def _round_up(x, m):
    return ((x + m - 1) // m) * m


def _pick_tile(n, prefs, min_blocks=1):
    for p in prefs:
        if p <= n and n % p == 0 and n // p >= min_blocks:
            return p
    for p in prefs:
        if p <= n and n % p == 0:
            return p
    return n


def binomial_loss(inputs, targets):
    """Pallas BinomialLoss forward (hard_mining=None).

    Returns (loss, prec, mean_pos_sim, mean_neg_sim)."""
    inputs = jnp.asarray(inputs, dtype=jnp.float32)
    n, d = inputs.shape
    targets = jnp.asarray(targets).astype(jnp.int32).reshape(n)

    # Per-row positive-pair counts (include the self pair); removes one select
    # and one lane reduction per (i, j) tile from the O(N^2) inner loop.
    pos_counts = jnp.sum(
        (targets[:, None] == targets[None, :]).astype(jnp.float32), axis=1)

    # Pad N so tuned (8,128)-aligned tiles always apply; padded columns are
    # masked in-kernel and padded rows are zeroed at finalize.
    n_pad = _round_up(n, 128) if n > 128 else _round_up(n, 8)
    pad = n_pad - n
    padded = pad > 0

    # >= 2 row blocks whenever possible so both v7x TensorCores get work.
    tm = _pick_tile(n_pad, (512, 256, 128, 64, 32, 16, 8), min_blocks=2)
    tn = _pick_tile(n_pad, (512, 256, 128), min_blocks=1)
    assert n_pad - n < tm          # last real row lives in the last row block
    grid = (n_pad // tm, n_pad // tn)
    r = grid[0]
    acc_w = 128 if tn >= 128 else tn

    use_bf16 = d >= 128            # at tiny D the MXU is not the bottleneck
    x = inputs.astype(jnp.bfloat16) if use_bf16 else inputs   # wrapper pre-cast
    if padded:
        x = jnp.pad(x, ((0, pad), (0, 0)))
        targets_p = jnp.pad(targets, (0, pad), constant_values=-1)
        pos_counts = jnp.pad(pos_counts, (0, pad), constant_values=1.0)
    else:
        targets_p = targets

    t_rows = targets_p.reshape(n_pad, 1)
    t_cols = targets_p.reshape(1, n_pad)
    pc = pos_counts.reshape(n_pad, 1)
    cvalid = (jnp.arange(n_pad, dtype=jnp.int32) < n).astype(jnp.int32).reshape(1, n_pad)

    kernel = functools.partial(_binomial_kernel, n_total=n, padded=padded)

    # Rough per-step VMEM estimate (double-buffered inputs + live f32 pair tiles
    # + accumulators).  Only raise the scoped limit when the default is tight,
    # and never above what the current chip physically has (64 MiB on v7x).
    itemsize = 2 if use_bf16 else 4
    vmem_est = (2 * 2 * (tm + tn) * d * itemsize
                + 3 * tm * tn * 4
                + 4 * tm * acc_w * 4
                + (256 << 10))
    params = {"dimension_semantics": ("parallel", "arbitrary")}
    if vmem_est > (24 << 20):
        try:
            cap = int(pltpu.get_tpu_info().vmem_capacity_bytes)
        except Exception:
            cap = 64 << 20
        params["vmem_limit_bytes"] = int(min(vmem_est * 2, (cap * 3) // 4))
    compiler_params = pltpu.CompilerParams(**params)

    out = pl.pallas_call(
        kernel,
        out_shape=jax.ShapeDtypeStruct((r * 8, 128), jnp.float32),
        grid=grid,
        in_specs=[
            pl.BlockSpec((tm, d), lambda i, j: (i, 0)),   # X row block (resident over j)
            pl.BlockSpec((tn, d), lambda i, j: (j, 0)),   # X column block (streamed)
            pl.BlockSpec((tm, 1), lambda i, j: (i, 0)),   # row labels
            pl.BlockSpec((1, tn), lambda i, j: (0, j)),   # column labels
            pl.BlockSpec((tm, 1), lambda i, j: (i, 0)),   # per-row positive counts
            pl.BlockSpec((1, tn), lambda i, j: (0, j)),   # column validity (padding)
        ],
        out_specs=pl.BlockSpec((8, 128), lambda i, j: (i, 0)),
        scratch_shapes=[pltpu.VMEM((tm, acc_w), jnp.float32) for _ in range(4)],
        compiler_params=compiler_params,
    )(x, x, t_rows, t_cols, pc, cvalid)

    out = out.reshape(r, 8, 128)
    loss = jnp.sum(out[:, 0, 0]) / n
    prec = jnp.sum(out[:, 0, 1]) / n
    mpos = out[-1, 0, 2]
    mneg = out[-1, 0, 3]
    return loss, prec, mpos, mneg


def binomial_loss_ref(inputs, targets):
    """NumPy reference mirroring the PyTorch loop (hard_mining=None)."""
    x = np.asarray(inputs, dtype=np.float32)
    t = np.asarray(targets)
    n = x.shape[0]
    sim = x @ x.T
    losses, c = [], 0
    pos_pair_ = neg_pair_ = None
    for i in range(n):
        same = t == t[i]
        pos_pair_ = sim[i][same]
        neg_pair_ = sim[i][~same]
        pos_loss = np.mean(np.logaddexp(0.0, -BETA * (pos_pair_ - MARGIN)))
        if neg_pair_.size == 0:
            c += 1
            continue
        neg_loss = np.mean(np.logaddexp(0.0, ALPHA * (neg_pair_ - MARGIN)))
        losses.append(pos_loss + neg_loss)
    loss = float(sum(losses) / n) if losses else 0.0
    prec = float(c) / n
    mpos = float(np.mean(pos_pair_))
    mneg = float(np.mean(neg_pair_)) if neg_pair_.size else float("nan")
    return loss, prec, mpos, mneg


if __name__ == "__main__":
    key = jax.random.PRNGKey(0)

    # 1) Small check: single-block grid, f32 matmul path.
    k1, k2 = jax.random.split(key)
    n, d = 8, 32
    x = jax.random.normal(k1, (n, d), dtype=jnp.float32)
    x = x / jnp.linalg.norm(x, axis=1, keepdims=True)
    t = jax.random.randint(k2, (n,), 0, 3, dtype=jnp.int32)
    res = binomial_loss(x, t)
    jax.block_until_ready(res)
    ref = binomial_loss_ref(np.asarray(x), np.asarray(t))
    for got, want in zip(res, ref):
        np.testing.assert_allclose(float(got), want, rtol=1e-4, atol=1e-5)

    # 2) Padding check: N not (8,128)-friendly -> padded rows/columns + masks.
    k3, k4 = jax.random.split(k2)
    n, d = 37, 16
    x = jax.random.normal(k3, (n, d), dtype=jnp.float32)
    x = x / jnp.linalg.norm(x, axis=1, keepdims=True)
    t = jax.random.randint(k4, (n,), 0, 4, dtype=jnp.int32)
    res = binomial_loss(x, t)
    jax.block_until_ready(res)
    ref = binomial_loss_ref(np.asarray(x), np.asarray(t))
    for got, want in zip(res, ref):
        np.testing.assert_allclose(float(got), want, rtol=1e-4, atol=1e-4)

    # 3) Larger check: 2x2 tiled grid, parallel row axis, deferred reductions,
    # bf16 pre-cast matmul (hence looser tolerance).
    k5, k6 = jax.random.split(k4)
    n, d = 1024, 128
    x = jax.random.normal(k5, (n, d), dtype=jnp.float32)
    x = x / jnp.linalg.norm(x, axis=1, keepdims=True)
    t = jax.random.randint(k6, (n,), 0, 10, dtype=jnp.int32)
    res = binomial_loss(x, t)
    jax.block_until_ready(res)
    ref = binomial_loss_ref(np.asarray(x), np.asarray(t))
    for got, want in zip(res, ref):
        np.testing.assert_allclose(float(got), want, rtol=2e-3, atol=2e-3)

    print("KERNEL_OK")
</pallas_src>

<mosaic_0001>
module attributes {stable_mosaic.version = 11 : i64} {
  func.func @_binomial_kernel(%arg0: i32, %arg1: i32, %arg2: memref<8x32xf32, #tpu.memory_space<vmem>>, %arg3: memref<8x32xf32, #tpu.memory_space<vmem>>, %arg4: memref<8x1xi32, #tpu.memory_space<vmem>>, %arg5: memref<1x8xi32, #tpu.memory_space<vmem>>, %arg6: memref<8x1xf32, #tpu.memory_space<vmem>>, %arg7: memref<1x8xi32, #tpu.memory_space<vmem>>, %arg8: memref<8x128xf32, #tpu.memory_space<vmem>>, %arg9: memref<8x8xf32, #tpu.memory_space<vmem>>, %arg10: memref<8x8xf32, #tpu.memory_space<vmem>>, %arg11: memref<8x8xf32, #tpu.memory_space<vmem>>, %arg12: memref<8x8xf32, #tpu.memory_space<vmem>>) attributes {dimension_semantics = [#tpu.dimension_semantics<parallel>, #tpu.dimension_semantics<arbitrary>], iteration_bounds = array<i64: 1, 1>, scalar_prefetch = 0 : i64, scratch_operands = 4 : i64, tpu.core_type = #tpu.core_type<tc>, window_params = [{transform_indices = @transform_0, window_bounds = array<i64: 8, 32>}, {transform_indices = @transform_1, window_bounds = array<i64: 8, 32>}, {transform_indices = @transform_2, window_bounds = array<i64: 8, 1>}, {transform_indices = @transform_3, window_bounds = array<i64: 1, 8>}, {transform_indices = @transform_4, window_bounds = array<i64: 8, 1>}, {transform_indices = @transform_5, window_bounds = array<i64: 1, 8>}, {transform_indices = @transform_6, window_bounds = array<i64: 8, 128>}]} {
    %c0_i32 = arith.constant 0 : i32
    %0 = arith.cmpi eq, %arg1, %c0_i32 : i32
    %1 = arith.extui %0 : i1 to i32
    %c0_i32_0 = arith.constant 0 : i32
    %2 = arith.cmpi ne, %1, %c0_i32_0 : i32
    scf.if %2 {
      %cst_26 = arith.constant 0.000000e+00 : f32
      %39 = vector.broadcast %cst_26 : f32 to vector<8x8xf32>
      %c0_27 = arith.constant 0 : index
      %c0_28 = arith.constant 0 : index
      %40 = vector.load %arg9[%c0_27, %c0_28] : memref<8x8xf32, #tpu.memory_space<vmem>>, vector<8x8xf32>
      tpu.vector_store %arg9[%c0_27, %c0_28], %39 {strides = array<i32>} : memref<8x8xf32, #tpu.memory_space<vmem>>, vector<8x8xf32>,
      %cst_29 = arith.constant 0.000000e+00 : f32
      %41 = vector.broadcast %cst_29 : f32 to vector<8x8xf32>
      %c0_30 = arith.constant 0 : index
      %c0_31 = arith.constant 0 : index
      %42 = vector.load %arg10[%c0_30, %c0_31] : memref<8x8xf32, #tpu.memory_space<vmem>>, vector<8x8xf32>
      tpu.vector_store %arg10[%c0_30, %c0_31], %41 {strides = array<i32>} : memref<8x8xf32, #tpu.memory_space<vmem>>, vector<8x8xf32>,
      %cst_32 = arith.constant 0.000000e+00 : f32
      %43 = vector.broadcast %cst_32 : f32 to vector<8x8xf32>
      %c0_33 = arith.constant 0 : index
      %c0_34 = arith.constant 0 : index
      %44 = vector.load %arg11[%c0_33, %c0_34] : memref<8x8xf32, #tpu.memory_space<vmem>>, vector<8x8xf32>
      tpu.vector_store %arg11[%c0_33, %c0_34], %43 {strides = array<i32>} : memref<8x8xf32, #tpu.memory_space<vmem>>, vector<8x8xf32>,
      %cst_35 = arith.constant 0.000000e+00 : f32
      %45 = vector.broadcast %cst_35 : f32 to vector<8x8xf32>
      %c0_36 = arith.constant 0 : index
      %c0_37 = arith.constant 0 : index
      %46 = vector.load %arg12[%c0_36, %c0_37] : memref<8x8xf32, #tpu.memory_space<vmem>>, vector<8x8xf32>
      tpu.vector_store %arg12[%c0_36, %c0_37], %45 {strides = array<i32>} : memref<8x8xf32, #tpu.memory_space<vmem>>, vector<8x8xf32>,
    } else {
    }
    %c0 = arith.constant 0 : index
    %c0_1 = arith.constant 0 : index
    %3 = vector.load %arg2[%c0, %c0_1] : memref<8x32xf32, #tpu.memory_space<vmem>>, vector<8x32xf32>
    %c0_2 = arith.constant 0 : index
    %c0_3 = arith.constant 0 : index
    %4 = vector.load %arg3[%c0_2, %c0_3] : memref<8x32xf32, #tpu.memory_space<vmem>>, vector<8x32xf32>
    %cst = arith.constant dense<0.000000e+00> : vector<8x8xf32>
    %5 = tpu.matmul %3, %4, %cst {dimension_numbers = #tpu.dot_dimension_numbers<[1], [1], [0], [0], [0, 0, 1, 0], [], []>} : vector<8x32xf32>, vector<8x32xf32>, vector<8x8xf32> -> vector<8x8xf32>
    %c0_4 = arith.constant 0 : index
    %c0_5 = arith.constant 0 : index
    %6 = vector.load %arg4[%c0_4, %c0_5] : memref<8x1xi32, #tpu.memory_space<vmem>>, vector<8x1xi32>
    %c0_6 = arith.constant 0 : index
    %c0_7 = arith.constant 0 : index
    %7 = vector.load %arg5[%c0_6, %c0_7] : memref<1x8xi32, #tpu.memory_space<vmem>>, vector<1x8xi32>
    %8 = vector.broadcast %6 : vector<8x1xi32> to vector<8x8xi32>
    %9 = vector.broadcast %7 : vector<1x8xi32> to vector<8x8xi32>
    %10 = arith.cmpi eq, %8, %9 : vector<8x8xi32>
    %cst_8 = arith.constant dense<true> : vector<8x8xi1>
    %11 = arith.xori %10, %cst_8 : vector<8x8xi1>
    %cst_9 = arith.constant 5.000000e-01 : f32
    %12 = vector.broadcast %cst_9 : f32 to vector<8x8xf32>
    %13 = arith.subf %12, %5 : vector<8x8xf32>
    %14 = math.absf %13 : vector<8x8xf32>
    %cst_10 = arith.constant 0.000000e+00 : f32
    %15 = vector.broadcast %cst_10 : f32 to vector<8x8xf32>
    %16 = arith.subf %15, %14 : vector<8x8xf32>
    %17 = math.exp %16 : vector<8x8xf32>
    %18 = math.log1p %17 : vector<8x8xf32>
    %cst_11 = arith.constant 0.000000e+00 : f32
    %19 = vector.broadcast %cst_11 : f32 to vector<8x8xf32>
    %20 = arith.maximumf %13, %19 : vector<8x8xf32>
    %21 = arith.addf %18, %20 : vector<8x8xf32>
    %22 = arith.subf %21, %13 : vector<8x8xf32>
    %c0_12 = arith.constant 0 : index
    %c0_13 = arith.constant 0 : index
    %23 = vector.load %arg9[%c0_12, %c0_13] : memref<8x8xf32, #tpu.memory_space<vmem>>, vector<8x8xf32>
    %cst_14 = arith.constant 0.000000e+00 : f32
    %24 = vector.broadcast %cst_14 : f32 to vector<8x8xf32>
    %25 = arith.select %10, %21, %24 : vector<8x8xi1>, vector<8x8xf32>
    %26 = arith.addf %23, %25 : vector<8x8xf32>
    %c0_15 = arith.constant 0 : index
    %c0_16 = arith.constant 0 : index
    %27 = vector.load %arg9[%c0_15, %c0_16] : memref<8x8xf32, #tpu.memory_space<vmem>>, vector<8x8xf32>
    tpu.vector_store %arg9[%c0_15, %c0_16], %26 {strides = array<i32>} : memref<8x8xf32, #tpu.memory_space<vmem>>, vector<8x8xf32>,
    %c0_17 = arith.constant 0 : index
    %c0_18 = arith.constant 0 : index
    %28 = vector.load %arg10[%c0_17, %c0_18] : memref<8x8xf32, #tpu.memory_space<vmem>>, vector<8x8xf32>
    %cst_19 = arith.constant 0.000000e+00 : f32
    %29 = vector.broadcast %cst_19 : f32 to vector<8x8xf32>
    %30 = arith.select %11, %22, %29 : vector<8x8xi1>, vector<8x8xf32>
    %31 = arith.addf %28, %30 : vector<8x8xf32>
    %c0_20 = arith.constant 0 : index
    %c0_21 = arith.constant 0 : index
    %32 = vector.load %arg10[%c0_20, %c0_21] : memref<8x8xf32, #tpu.memory_space<vmem>>, vector<8x8xf32>
    tpu.vector_store %arg10[%c0_20, %c0_21], %31 {strides = array<i32>} : memref<8x8xf32, #tpu.memory_space<vmem>>, vector<8x8xf32>,
    %c0_i32_22 = arith.constant 0 : i32
    %33 = arith.cmpi eq, %arg0, %c0_i32_22 : i32
    %34 = arith.extui %33 : i1 to i32
    %c0_i32_23 = arith.constant 0 : i32
    %35 = arith.cmpi ne, %34, %c0_i32_23 : i32
    scf.if %35 {
      %c0_26 = arith.constant 0 : index
      %c0_27 = arith.constant 0 : index
      %39 = vector.load %arg11[%c0_26, %c0_27] : memref<8x8xf32, #tpu.memory_space<vmem>>, vector<8x8xf32>
      %cst_28 = arith.constant 0.000000e+00 : f32
      %40 = vector.broadcast %cst_28 : f32 to vector<8x8xf32>
      %41 = arith.select %10, %5, %40 : vector<8x8xi1>, vector<8x8xf32>
      %42 = arith.addf %39, %41 : vector<8x8xf32>
      %c0_29 = arith.constant 0 : index
      %c0_30 = arith.constant 0 : index
      %43 = vector.load %arg11[%c0_29, %c0_30] : memref<8x8xf32, #tpu.memory_space<vmem>>, vector<8x8xf32>
      tpu.vector_store %arg11[%c0_29, %c0_30], %42 {strides = array<i32>} : memref<8x8xf32, #tpu.memory_space<vmem>>, vector<8x8xf32>,
      %c0_31 = arith.constant 0 : index
      %c0_32 = arith.constant 0 : index
      %44 = vector.load %arg12[%c0_31, %c0_32] : memref<8x8xf32, #tpu.memory_space<vmem>>, vector<8x8xf32>
      %45 = arith.addf %44, %5 : vector<8x8xf32>
      %c0_33 = arith.constant 0 : index
      %c0_34 = arith.constant 0 : index
      %46 = vector.load %arg12[%c0_33, %c0_34] : memref<8x8xf32, #tpu.memory_space<vmem>>, vector<8x8xf32>
      tpu.vector_store %arg12[%c0_33, %c0_34], %45 {strides = array<i32>} : memref<8x8xf32, #tpu.memory_space<vmem>>, vector<8x8xf32>,
    } else {
    }
    %c0_i32_24 = arith.constant 0 : i32
    %36 = arith.cmpi eq, %arg1, %c0_i32_24 : i32
    %37 = arith.extui %36 : i1 to i32
    %c0_i32_25 = arith.constant 0 : i32
    %38 = arith.cmpi ne, %37, %c0_i32_25 : i32
    scf.if %38 {
      %c0_26 = arith.constant 0 : index
      %c0_27 = arith.constant 0 : index
      %39 = vector.load %arg9[%c0_26, %c0_27] : memref<8x8xf32, #tpu.memory_space<vmem>>, vector<8x8xf32>
      %cst_28 = arith.constant dense<0.000000e+00> : vector<8xf32>
      %40 = vector.multi_reduction <add>, %39, %cst_28 [1] : vector<8x8xf32> to vector<8xf32>
      %41 = vector.shape_cast %40 : vector<8xf32> to vector<8x1xf32>
      %c0_29 = arith.constant 0 : index
      %c0_30 = arith.constant 0 : index
      %42 = vector.load %arg10[%c0_29, %c0_30] : memref<8x8xf32, #tpu.memory_space<vmem>>, vector<8x8xf32>
      %cst_31 = arith.constant dense<0.000000e+00> : vector<8xf32>
      %43 = vector.multi_reduction <add>, %42, %cst_31 [1] : vector<8x8xf32> to vector<8xf32>
      %44 = vector.shape_cast %43 : vector<8xf32> to vector<8x1xf32>
      %c0_32 = arith.constant 0 : index
      %c0_33 = arith.constant 0 : index
      %45 = vector.load %arg6[%c0_32, %c0_33] : memref<8x1xf32, #tpu.memory_space<vmem>>, vector<8x1xf32>
      %cst_34 = arith.constant 8.000000e+00 : f32
      %46 = vector.broadcast %cst_34 : f32 to vector<8x1xf32>
      %47 = arith.subf %46, %45 : vector<8x1xf32>
      %cst_35 = arith.constant 0.000000e+00 : f32
      %48 = vector.broadcast %cst_35 : f32 to vector<8x1xf32>
      %49 = arith.cmpf ogt, %47, %48 : vector<8x1xf32>
      %50 = arith.extui %49 : vector<8x1xi1> to vector<8x1xi32>
      %51 = arith.sitofp %50 : vector<8x1xi32> to vector<8x1xf32>
      %52 = tpu.iota {dimensions = array<i32: 0>} : vector<8x1xi32>
      %c8_i32 = arith.constant 8 : i32
      %53 = arith.muli %arg0, %c8_i32 : i32
      %54 = vector.broadcast %53 : i32 to vector<8x1xi32>
      %55 = arith.addi %54, %52 : vector<8x1xi32>
      %56 = arith.divf %41, %45 : vector<8x1xf32>
      %cst_36 = arith.constant 1.000000e+00 : f32
      %57 = vector.broadcast %cst_36 : f32 to vector<8x1xf32>
      %58 = arith.maximumf %47, %57 : vector<8x1xf32>
      %59 = arith.divf %44, %58 : vector<8x1xf32>
      %60 = arith.addf %56, %59 : vector<8x1xf32>
      %61 = arith.mulf %60, %51 : vector<8x1xf32>
      %cst_37 = arith.constant 1.000000e+00 : f32
      %62 = vector.broadcast %cst_37 : f32 to vector<8x1xf32>
      %63 = arith.subf %62, %51 : vector<8x1xf32>
      %64 = vector.shape_cast %63 : vector<8x1xf32> to vector<1x8x1xf32>
      %cst_38 = arith.constant dense<0.000000e+00> : vector<1xf32>
      %65 = vector.multi_reduction <add>, %64, %cst_38 [1, 2] : vector<1x8x1xf32> to vector<1xf32>
      %66 = vector.shape_cast %65 : vector<1xf32> to vector<1x1x1xf32>
      %67 = vector.extract %66[0, 0, 0] : f32 from vector<1x1x1xf32>
      %68 = vector.shape_cast %61 : vector<8x1xf32> to vector<1x8x1xf32>
      %cst_39 = arith.constant dense<0.000000e+00> : vector<1xf32>
      %69 = vector.multi_reduction <add>, %68, %cst_39 [1, 2] : vector<1x8x1xf32> to vector<1xf32>
      %70 = vector.shape_cast %69 : vector<1xf32> to vector<1x1x1xf32>
      %71 = vector.extract %70[0, 0, 0] : f32 from vector<1x1x1xf32>
      %c7_i32 = arith.constant 7 : i32
      %72 = vector.broadcast %c7_i32 : i32 to vector<8x1xi32>
      %73 = arith.cmpi eq, %55, %72 : vector<8x1xi32>
      %c0_40 = arith.constant 0 : index
      %c0_41 = arith.constant 0 : index
      %74 = vector.load %arg11[%c0_40, %c0_41] : memref<8x8xf32, #tpu.memory_space<vmem>>, vector<8x8xf32>
      %cst_42 = arith.constant dense<0.000000e+00> : vector<8xf32>
      %75 = vector.multi_reduction <add>, %74, %cst_42 [1] : vector<8x8xf32> to vector<8xf32>
      %76 = vector.shape_cast %75 : vector<8xf32> to vector<8x1xf32>
      %c0_43 = arith.constant 0 : index
      %c0_44 = arith.constant 0 : index
      %77 = vector.load %arg12[%c0_43, %c0_44] : memref<8x8xf32, #tpu.memory_space<vmem>>, vector<8x8xf32>
      %cst_45 = arith.constant dense<0.000000e+00> : vector<8xf32>
      %78 = vector.multi_reduction <add>, %77, %cst_45 [1] : vector<8x8xf32> to vector<8xf32>
      %79 = vector.shape_cast %78 : vector<8xf32> to vector<8x1xf32>
      %80 = arith.divf %76, %45 : vector<8x1xf32>
      %cst_46 = arith.constant 0.000000e+00 : f32
      %81 = vector.broadcast %cst_46 : f32 to vector<8x1xf32>
      %82 = arith.select %73, %80, %81 : vector<8x1xi1>, vector<8x1xf32>
      %83 = vector.shape_cast %82 : vector<8x1xf32> to vector<1x8x1xf32>
      %cst_47 = arith.constant dense<0.000000e+00> : vector<1xf32>
      %84 = vector.multi_reduction <add>, %83, %cst_47 [1, 2] : vector<1x8x1xf32> to vector<1xf32>
      %85 = vector.shape_cast %84 : vector<1xf32> to vector<1x1x1xf32>
      %86 = vector.extract %85[0, 0, 0] : f32 from vector<1x1x1xf32>
      %87 = arith.subf %79, %76 : vector<8x1xf32>
      %cst_48 = arith.constant 1.000000e+00 : f32
      %88 = vector.broadcast %cst_48 : f32 to vector<8x1xf32>
      %89 = arith.maximumf %47, %88 : vector<8x1xf32>
      %90 = arith.divf %87, %89 : vector<8x1xf32>
      %cst_49 = arith.constant 0.000000e+00 : f32
      %91 = vector.broadcast %cst_49 : f32 to vector<8x1xf32>
      %92 = arith.select %73, %90, %91 : vector<8x1xi1>, vector<8x1xf32>
      %93 = vector.shape_cast %92 : vector<8x1xf32> to vector<1x8x1xf32>
      %cst_50 = arith.constant dense<0.000000e+00> : vector<1xf32>
      %94 = vector.multi_reduction <add>, %93, %cst_50 [1, 2] : vector<1x8x1xf32> to vector<1xf32>
      %95 = vector.shape_cast %94 : vector<1xf32> to vector<1x1x1xf32>
      %96 = vector.extract %95[0, 0, 0] : f32 from vector<1x1x1xf32>
      %97 = tpu.iota {dimensions = array<i32: 1>} : vector<8x128xi32>
      %c0_i32_51 = arith.constant 0 : i32
      %98 = vector.broadcast %c0_i32_51 : i32 to vector<8x128xi32>
      %99 = arith.cmpi eq, %97, %98 : vector<8x128xi32>
      %cst_52 = arith.constant 0.000000e+00 : f32
      %100 = vector.broadcast %71 : f32 to vector<8x128xf32>
      %101 = vector.broadcast %cst_52 : f32 to vector<8x128xf32>
      %102 = arith.select %99, %100, %101 : vector<8x128xi1>, vector<8x128xf32>
      %c1_i32 = arith.constant 1 : i32
      %103 = vector.broadcast %c1_i32 : i32 to vector<8x128xi32>
      %104 = arith.cmpi eq, %97, %103 : vector<8x128xi32>
      %cst_53 = arith.constant 0.000000e+00 : f32
      %105 = vector.broadcast %67 : f32 to vector<8x128xf32>
      %106 = vector.broadcast %cst_53 : f32 to vector<8x128xf32>
      %107 = arith.select %104, %105, %106 : vector<8x128xi1>, vector<8x128xf32>
      %108 = arith.addf %102, %107 : vector<8x128xf32>
      %c2_i32 = arith.constant 2 : i32
      %109 = vector.broadcast %c2_i32 : i32 to vector<8x128xi32>
      %110 = arith.cmpi eq, %97, %109 : vector<8x128xi32>
      %cst_54 = arith.constant 0.000000e+00 : f32
      %111 = vector.broadcast %86 : f32 to vector<8x128xf32>
      %112 = vector.broadcast %cst_54 : f32 to vector<8x128xf32>
      %113 = arith.select %110, %111, %112 : vector<8x128xi1>, vector<8x128xf32>
      %114 = arith.addf %108, %113 : vector<8x128xf32>
      %c3_i32 = arith.constant 3 : i32
      %115 = vector.broadcast %c3_i32 : i32 to vector<8x128xi32>
      %116 = arith.cmpi eq, %97, %115 : vector<8x128xi32>
      %cst_55 = arith.constant 0.000000e+00 : f32
      %117 = vector.broadcast %96 : f32 to vector<8x128xf32>
      %118 = vector.broadcast %cst_55 : f32 to vector<8x128xf32>
      %119 = arith.select %116, %117, %118 : vector<8x128xi1>, vector<8x128xf32>
      %120 = arith.addf %114, %119 : vector<8x128xf32>
      %c0_56 = arith.constant 0 : index
      %c0_57 = arith.constant 0 : index
      %121 = vector.load %arg8[%c0_56, %c0_57] : memref<8x128xf32, #tpu.memory_space<vmem>>, vector<8x128xf32>
      tpu.vector_store %arg8[%c0_56, %c0_57], %120 {strides = array<i32>} : memref<8x128xf32, #tpu.memory_space<vmem>>, vector<8x128xf32>,
    } else {
    }
    return
  }
  func.func @transform_0(%arg0: i32, %arg1: i32) -> (i32, i32) {
    %c0_i32 = arith.constant 0 : i32
    %c0_i32_0 = arith.constant 0 : i32
    return %arg0, %c0_i32 : i32, i32
  }
  func.func @transform_1(%arg0: i32, %arg1: i32) -> (i32, i32) {
    %c0_i32 = arith.constant 0 : i32
    %c0_i32_0 = arith.constant 0 : i32
    return %arg1, %c0_i32 : i32, i32
  }
  func.func @transform_2(%arg0: i32, %arg1: i32) -> (i32, i32) {
    %c0_i32 = arith.constant 0 : i32
    %c0_i32_0 = arith.constant 0 : i32
    return %arg0, %c0_i32 : i32, i32
  }
  func.func @transform_3(%arg0: i32, %arg1: i32) -> (i32, i32) {
    %c0_i32 = arith.constant 0 : i32
    %c0_i32_0 = arith.constant 0 : i32
    return %c0_i32, %arg1 : i32, i32
  }
  func.func @transform_4(%arg0: i32, %arg1: i32) -> (i32, i32) {
    %c0_i32 = arith.constant 0 : i32
    %c0_i32_0 = arith.constant 0 : i32
    return %arg0, %c0_i32 : i32, i32
  }
  func.func @transform_5(%arg0: i32, %arg1: i32) -> (i32, i32) {
    %c0_i32 = arith.constant 0 : i32
    %c0_i32_0 = arith.constant 0 : i32
    return %c0_i32, %arg1 : i32, i32
  }
  func.func @transform_6(%arg0: i32, %arg1: i32) -> (i32, i32) {
    %c0_i32 = arith.constant 0 : i32
    %c0_i32_0 = arith.constant 0 : i32
    return %arg0, %c0_i32 : i32, i32
  }
}

</mosaic_0001>

<llo_original>
// kernel: tpu_custom_call.1
$region0: #{tpu_custom_call.1}
  #allocation0 [shape = 'u32[]', space=smem, size = 0x4, offset = 0x4, fixed_abs, tag = 'smem constant byte address 0x4 - core index']
  #allocation1 [shape = 'u32[72,128]{1,0:T(1,128)}', space=vmem, size = 0x9000, scoped, tag = 'internal scratch']
  #allocation2 [shape = 'f32[8,8]{1,0:T(8,128)}', space=vmem, size = 0x1000, scoped, tag = 'scratch operand']
  #allocation3 [shape = 'f32[8,8]{1,0:T(8,128)}', space=vmem, size = 0x1000, scoped, tag = 'scratch operand']
  #allocation4 [shape = 'f32[8,8]{1,0:T(8,128)}', space=vmem, size = 0x1000, scoped, tag = 'scratch operand']
  #allocation5 [shape = 'f32[8,8]{1,0:T(8,128)}', space=vmem, size = 0x1000, scoped, tag = 'scratch operand']
  %s0 = inlined_call_operand.vmem [shape: f32[8,32], index: 0, kind: input, shape index: {}]
  %s1 = inlined_call_operand.vmem [shape: f32[8,32], index: 1, kind: input, shape index: {}]
  %s2 = inlined_call_operand.vmem [shape: s32[8,1], index: 2, kind: input, shape index: {}]
  %s3 = inlined_call_operand.vmem [shape: s32[1,8], index: 3, kind: input, shape index: {}]
  %s4 = inlined_call_operand.vmem [shape: f32[8,1], index: 4, kind: input, shape index: {}]
  %s5 = inlined_call_operand.vmem [shape: s32[1,8], index: 5, kind: input, shape index: {}]
  %s6 = inlined_call_operand.hbm [shape: f32[8,128], index: 6, kind: output, shape index: {}]
  %s7 = sld [smem:[#allocation0]]
  $region46: #{tpu_custom_call.1} parent=0
    _
  %s9 = ssub.s32 1, %s7
  %s10 = scalar_select 0, %s9, %s7
  $region1: #{tpu_custom_call.1} parent=0
    #allocation6 [shape = 'u8[4096]{0}', space=vmem, size = 0x1000, scoped, tag = 'output window, operand 0, single buffered']
    #allocation7 [shape = 's32[1]{0}', space=sflag, size = 0x4, scoped, tag = 'scoped memory for tpu_custom_call.1']
    %11 = vsyncpa [#allocation7], 0
    // Predicated region
    $region2: #{tpu_custom_call.1} parent=1 // pred_check
      _
    $region3: #{tpu_custom_call.1} parent=1 // pred_check_branch
      %13 = sbr.rel (0) target = $region5
    $region4: #{tpu_custom_call.1} parent=1 // pred_region
      _
    $region5: #{tpu_custom_call.1} parent=1 // pred_fallthru
      _
    // Predicated region
    $region6: #{tpu_custom_call.1} parent=1 // pred_check
      _
    $region7: #{tpu_custom_call.1} parent=1 // pred_check_branch
      %15 = sbr.rel (0) target = $region9
    $region8: #{tpu_custom_call.1} parent=1 // pred_region
      _
    $region9: #{tpu_custom_call.1} parent=1 // pred_fallthru
      _
    // Predicated region
    $region10: #{tpu_custom_call.1} parent=1 // pred_check
      _
    $region11: #{tpu_custom_call.1} parent=1 // pred_check_branch
      %17 = sbr.rel (0) target = $region13
    $region12: #{tpu_custom_call.1} parent=1 // pred_region
      _
    $region13: #{tpu_custom_call.1} parent=1 // pred_fallthru
      _
    // Predicated region
    $region14: #{tpu_custom_call.1} parent=1 // pred_check
      _
    $region15: #{tpu_custom_call.1} parent=1 // pred_check_branch
      %19 = sbr.rel (0) target = $region17
    $region16: #{tpu_custom_call.1} parent=1 // pred_region
      _
    $region17: #{tpu_custom_call.1} parent=1 // pred_fallthru
      _
    // Predicated region
    $region18: #{tpu_custom_call.1} parent=1 // pred_check
      _
    $region19: #{tpu_custom_call.1} parent=1 // pred_check_branch
      %21 = sbr.rel (0) target = $region21
    $region20: #{tpu_custom_call.1} parent=1 // pred_region
      _
    $region21: #{tpu_custom_call.1} parent=1 // pred_fallthru
      _
    // Predicated region
    $region22: #{tpu_custom_call.1} parent=1 // pred_check
      _
    $region23: #{tpu_custom_call.1} parent=1 // pred_check_branch
      %23 = sbr.rel (0) target = $region25
    $region24: #{tpu_custom_call.1} parent=1 // pred_region
      _
    $region25: #{tpu_custom_call.1} parent=1 // pred_fallthru
      _
    %p24 = scmp.eq.s32.totalorder 0, 0
    // Predicated region
    $region26: #{tpu_custom_call.1} parent=1 // pred_check
      %p25 = pneg %p24
    $region27: #{tpu_custom_call.1} parent=1 // pred_check_branch
      %27 = sbr.rel (%p25) target = $region29
    $region28: #{tpu_custom_call.1} parent=1 // pred_region
      %vm28 = vcmask 64512
      %29 = vst.msk [vmem:[#allocation2] sm:$0xff] %vm28, 0.0
      %30 = vst.msk [vmem:[#allocation3] sm:$0xff] %vm28, 0.0
      %31 = vst.msk [vmem:[#allocation4] sm:$0xff] %vm28, 0.0
      %32 = vst.msk [vmem:[#allocation5] sm:$0xff] %vm28, 0.0
    $region29: #{tpu_custom_call.1} parent=1 // pred_fallthru
      _
    %v33 = vld [vmem:[%s0] sm:$0xff]
    %v34 = vld [vmem:[%s1] sm:$0xff]
    %vm35 = vcmask 261120
    %v37 = vsel %vm35, %v33, 0
    %v40 = vsel %vm35, %v34, 0
    %42 = vmatpush.xpose.msra.mxu0 0.0
    %43 = vmatpush.xpose.msra.mxu0 0.0
    %44 = vmatpush.xpose.msra.mxu0 0.0
    %45 = vmatpush.xpose.msra.mxu0 0.0
    %46 = vmatpush.xpose.msra.mxu0 0.0
    %47 = vmatpush.xpose.msra.mxu0 0.0
    %48 = vmatpush.xpose.msra.mxu0 0.0
    %49 = vmatpush.xpose.msra.mxu0 0.0
    %50 = vmatpush.xpose.msra.mxu0 0.0
    %51 = vmatpush.xpose.msra.mxu0 0.0
    %52 = vmatpush.xpose.msra.mxu0 0.0
    %53 = vmatpush.xpose.msra.mxu0 0.0
    %54 = vmatpush.xpose.msra.mxu0 0.0
    %55 = vmatpush.xpose.msra.mxu0 0.0
    %56 = vmatpush.xpose.msra.mxu0 0.0
    %57 = vmatpush.xpose.msra.mxu0 %v40
    %58 = vmatmul.f32.gmra.mxu0 %v37
    %v59 = vpop.f32.mrf.mxu0
    %v60 = vadd.f32 0.0, %v59
    %61 = vdwg.mxu0
    %v62 = vld [vmem:[%s2] sm:$0xff]
    %v63 = vld [vmem:[%s3] sm:$0x1]
    %64 = vset.pattern.permute.xlu0 0
    %65 = vperm.xlu0 %64, %v62
    %v66 = vpop.permute.xlu0 %65
    %v67 = vperm.slane %v63, 0
    %vm68 = vcmp.eq.s32.totalorder %v66, %v67
    %vm69 = vmxor %vm68, 1
    %v70 = vsub.f32 0.5, %v60
    %v71 = vand.u32 2147483647, %v70
    %v72 = vsub.f32 0.0, %v71
    %v73 = vmul.f32 %v72, 1.442695
    %v74 = vpow.pop %v73
    %v75 = vadd.f32 %v74, 1.0
    %v76 = vlog2.pop %v75
    %v77 = vmul.f32 %v76, 0.6931472
    %v78 = vmul.f32 -0.5, %v74
    %v79 = vadd.f32 %v78, 1.0
    %v80 = vmul.f32 %v79, %v74
    %v81 = vand.u32 2147483647, %v74
    %vm82 = vcmp.lt.f32.partialorder %v81, 0.0004427343
    %v83 = vsel %vm82, %v80, %v77
    %v84 = vmax.f32 %v70, 0.0
    %v85 = vadd.f32 %v83, %v84
    %v86 = vsub.f32 %v85, %v70
    %v87 = vld [vmem:[#allocation2] sm:$0xff]
    %v88 = vsel %vm68, %v85, 0.0
    %v89 = vadd.f32 %v87, %v88
    %vm90 = vcmask 64512
    %91 = vst.msk [vmem:[#allocation2] sm:$0xff] %vm90, %v89
    %v92 = vld [vmem:[#allocation3] sm:$0xff]
    %v93 = vsel %vm69, %v86, 0.0
    %v94 = vadd.f32 %v92, %v93
    %95 = vst.msk [vmem:[#allocation3] sm:$0xff] %vm90, %v94
    %p96 = scmp.eq.s32.totalorder 0, 0
    // Predicated region
    $region30: #{tpu_custom_call.1} parent=1 // pred_check
      %p97 = pneg %p96
    $region31: #{tpu_custom_call.1} parent=1 // pred_check_branch
      %99 = sbr.rel (%p97) target = $region33
    $region32: #{tpu_custom_call.1} parent=1 // pred_region
      %v100 = vld [vmem:[#allocation4] sm:$0xff]
      %v101 = vsel %vm68, %v60, 0.0
      %v102 = vadd.f32 %v100, %v101
      %103 = vst.msk [vmem:[#allocation4] sm:$0xff] %vm90, %v102
      %v104 = vld [vmem:[#allocation5] sm:$0xff]
      %v105 = vadd.f32 %v104, %v60
      %106 = vst.msk [vmem:[#allocation5] sm:$0xff] %vm90, %v105
    $region33: #{tpu_custom_call.1} parent=1 // pred_fallthru
      _
    // Predicated region
    $region34: #{tpu_custom_call.1} parent=1 // pred_check
      %p107 = pneg %p24
    $region35: #{tpu_custom_call.1} parent=1 // pred_check_branch
      %109 = sbr.rel (%p107) target = $region37
    $region36: #{tpu_custom_call.1} parent=1 // pred_region
      %v110 = vld [vmem:[#allocation2] sm:$0xff]
      %v111 = vsel %vm90, %v110, 0.0
      %112 = vadd.xlane.f32.xlu0 %v111
      %v113 = vpop.xlane.xlu0 %112
      %v114 = vld [vmem:[#allocation3] sm:$0xff]
      %v115 = vsel %vm90, %v114, 0.0
      %116 = vadd.xlane.f32.xlu0 %v115
      %v117 = vpop.xlane.xlu0 %116
      %v118 = vld [vmem:[%s4] sm:$0xff]
      %v119 = vsub.f32 8.0, %v118
      %vm120 = vcmp.gt.f32.partialorder %v119, 0.0
      %v121 = vsel %vm120, 1, 0
      %v122 = vcvt.s32.f32 %v121
      %v123 = vlaneseq
      %v124 = vshrl.u32 %v123, 7
      %s125 = smul.u32 0, 8
      %v126 = vstv %s125
      %v127 = vadd.s32 %v126, %v124
      %v128 = vrcp.pop %v118
      %v129 = vmul.f32 %v118, %v128
      %v130 = vsub.f32 1.0, %v129
      %v131 = vmul.f32 %v128, %v130
      %v132 = vadd.f32 %v128, %v131
      %vm133 = vweird.f32 %v118
      %vm134 = vweird.f32 %v128
      %vm135 = vmor %vm133, %vm134
      %v136 = vsel %vm135, %v128, %v132
      %v137 = vand.u32 2147483647, %v118
      %vm138 = vcmp.eq.f32.partialorder %v137, 8.507059e+37
      %v139 = vand.u32 %v118, 2147483648
      %v140 = vor.u32 1.1754944e-38, %v139
      %v141 = vsel %vm138, %v140, %v136
      %v142 = vmul.f32 %v113, %v141
      %v143 = vmax.f32 %v119, 1.0
      %v144 = vrcp.pop %v143
      %v145 = vmul.f32 %v143, %v144
      %v146 = vsub.f32 1.0, %v145
      %v147 = vmul.f32 %v144, %v146
      %v148 = vadd.f32 %v144, %v147
      %vm149 = vweird.f32 %v143
      %vm150 = vweird.f32 %v144
      %vm151 = vmor %vm149, %vm150
      %v152 = vsel %vm151, %v144, %v148
      %v153 = vand.u32 2147483647, %v143
      %vm154 = vcmp.eq.f32.partialorder %v153, 8.507059e+37
      %v155 = vand.u32 %v143, 2147483648
      %v156 = vor.u32 1.1754944e-38, %v155
      %v157 = vsel %vm154, %v156, %v152
      %v158 = vmul.f32 %v117, %v157
      %v159 = vadd.f32 %v142, %v158
      %v160 = vmul.f32 %v159, %v122
      %v161 = vsub.f32 1.0, %v122
      %vm162 = vcmask 7168
      %v163 = vsel %vm162, %v161, 0.0
      %164 = vadd.xlane.f32.xlu0 %v163
      %v165 = vpop.xlane.xlu0 %164
      %v166 = vrot.slane %v165, 4
      %v167 = vadd.f32 %v165, %v166
      %v168 = vrot.slane %v167, 2
      %v169 = vadd.f32 %v167, %v168
      %v170 = vrot.slane %v169, 1
      %v171 = vadd.f32 %v169, %v170
      %s172 = vtos %v171
      %v173 = vsel %vm162, %v160, 0.0
      %174 = vadd.xlane.f32.xlu0 %v173
      %v175 = vpop.xlane.xlu0 %174
      %v176 = vrot.slane %v175, 4
      %v177 = vadd.f32 %v175, %v176
      %v178 = vrot.slane %v177, 2
      %v179 = vadd.f32 %v177, %v178
      %v180 = vrot.slane %v179, 1
      %v181 = vadd.f32 %v179, %v180
      %s182 = vtos %v181
      %vm183 = vcmp.eq.s32.totalorder %v127, 7
      %v184 = vld [vmem:[#allocation4] sm:$0xff]
      %v185 = vsel %vm90, %v184, 0.0
      %186 = vadd.xlane.f32.xlu0 %v185
      %v187 = vpop.xlane.xlu0 %186
      %v188 = vld [vmem:[#allocation5] sm:$0xff]
      %v189 = vsel %vm90, %v188, 0.0
      %190 = vadd.xlane.f32.xlu0 %v189
      %v191 = vpop.xlane.xlu0 %190
      %v192 = vmul.f32 %v187, %v141
      %v193 = vsel %vm183, %v192, 0.0
      %v194 = vsel %vm162, %v193, 0.0
      %195 = vadd.xlane.f32.xlu0 %v194
      %v196 = vpop.xlane.xlu0 %195
      %v197 = vrot.slane %v196, 4
      %v198 = vadd.f32 %v196, %v197
      %v199 = vrot.slane %v198, 2
      %v200 = vadd.f32 %v198, %v199
      %v201 = vrot.slane %v200, 1
      %v202 = vadd.f32 %v200, %v201
      %s203 = vtos %v202
      %v204 = vsub.f32 %v191, %v187
      %v205 = vmul.f32 %v204, %v157
      %v206 = vsel %vm183, %v205, 0.0
      %v207 = vsel %vm162, %v206, 0.0
      %208 = vadd.xlane.f32.xlu0 %v207
      %v209 = vpop.xlane.xlu0 %208
      %v210 = vrot.slane %v209, 4
      %v211 = vadd.f32 %v209, %v210
      %v212 = vrot.slane %v211, 2
      %v213 = vadd.f32 %v211, %v212
      %v214 = vrot.slane %v213, 1
      %v215 = vadd.f32 %v213, %v214
      %s216 = vtos %v215
      %v217 = vlaneseq
      %v218 = vand.u32 %v217, 127
      %vm219 = vcmp.eq.s32.totalorder %v218, 0
      %v220 = vstv %s182
      %v221 = vsel %vm219, %v220, 0.0
      %vm222 = vcmp.eq.s32.totalorder %v218, 1
      %v223 = vstv %s172
      %v224 = vsel %vm222, %v223, 0.0
      %v225 = vadd.f32 %v221, %v224
      %vm226 = vcmp.eq.s32.totalorder %v218, 2
      %v227 = vstv %s203
      %v228 = vsel %vm226, %v227, 0.0
      %v229 = vadd.f32 %v225, %v228
      %vm230 = vcmp.eq.s32.totalorder %v218, 3
      %v231 = vstv %s216
      %v232 = vsel %vm230, %v231, 0.0
      %v233 = vadd.f32 %v229, %v232
      %234 = vst [vmem:[#allocation6] sm:$0xff] %v233
    $region37: #{tpu_custom_call.1} parent=1 // pred_fallthru
      _
    // Predicated region
    $region38: #{tpu_custom_call.1} parent=1 // pred_check
      _
    $region39: #{tpu_custom_call.1} parent=1 // pred_check_branch
      %236 = sbr.rel (0) target = $region41
    $region40: #{tpu_custom_call.1} parent=1 // pred_region
      %238 = vsyncadd [#allocation7], 0
      %s240 = sshll.u32 [#allocation6], 4
      %s241 = int_to_ptr.vmem [resolvable:$true] %s240
      %s242 = sshll.u32 %s6, 4
      %s243 = int_to_ptr.hbm [resolvable:$true] %s242
      %245 = dma.vmem_to_hbm [thread:$0]  %s241, 128, %s243, [#allocation7]
    $region41: #{tpu_custom_call.1} parent=1 // pred_fallthru
      _
    // Predicated region
    $region42: #{tpu_custom_call.1} parent=1 // pred_check
      _
    $region43: #{tpu_custom_call.1} parent=1 // pred_check_branch
      %247 = sbr.rel (0) target = $region45
    $region44: #{tpu_custom_call.1} parent=1 // pred_region
      %249 = dma.done [#allocation7], 128
    $region45: #{tpu_custom_call.1} parent=1 // pred_fallthru
      _
    %250 = vsyncpa [#allocation7], 1

</llo_original>
